<compile_context>
chip_gen: v5e
topology: v5e:2x2
jax: 0.10.0
libtpu: 0.0.40
codegen_flags: <defaults>
</compile_context>

<pallas_src>
import functools

import jax
import jax.numpy as jnp
from jax.experimental import pallas as pl
from jax.experimental.pallas import tpu as pltpu

KMAX = 8                          # static upper bound on label ids
_TN_MAX = 65536                   # max lanes per N (reduction) tile
_VMEM_BUDGET = 20 * 1024 * 1024   # working-set budget used to size the N tile
_STATS_LANES = 128                # lane-dense output row width


def _make_stats_kernel(n_total, tn, needs_tail_mask):
    """Per-(batch, N-tile) masked statistics via VPU multiplies + lane reduces.

    pred_ref: (1, C, TN) native dtype
    lab_ref : (1, 1, TN) int32, text | (kernel << 16)
    out_ref : (1, KMAX, 128) f32; lanes 0..4 = [cardT, A, cardK, B, C]
    acc_ref : (KMAX, 128) f32 VMEM accumulator across N tiles
    """

    def kernel(pred_ref, lab_ref, out_ref, acc_ref):
        j = pl.program_id(1)

        @pl.when(j == 0)
        def _():
            acc_ref[...] = jnp.zeros_like(acc_ref)

        # pred stays in its native dtype over HBM->VMEM; cast in-register.
        p = pred_ref[0].astype(jnp.float32)                        # (C, TN)
        p2 = jnp.sum(p * p, axis=0, keepdims=True)                 # (1, TN)

        packed = lab_ref[0]                                        # (1, TN) i32
        tl = packed & 0xFFFF                                       # text labels
        kl = (packed >> 16) & 0xFFFF                               # kernel labels

        if needs_tail_mask:
            # Last tile may run past N: OOB lanes hold unspecified data.
            lane = jax.lax.broadcasted_iota(jnp.int32, (1, tn), 1)
            inb = (j * tn + lane) < n_total
            tl = jnp.where(inb, tl, -1)        # never matches any label id
            kl = jnp.where(inb, kl, -1)
            p2 = jnp.where(inb, p2, 0.0)       # garbage lanes may be NaN/Inf

        # (KMAX, 1) iota broadcast against (1, TN) labels -> (KMAX, TN) masks.
        lab = jax.lax.broadcasted_iota(jnp.int32, (KMAX, 1), 0) + 1
        mt = (tl == lab).astype(jnp.float32)                       # (KMAX, TN)
        mk = (kl == lab).astype(jnp.float32)                       # (KMAX, TN)

        pt = mt * p2                     # text-masked p^2
        pk = mk * p2                     # kernel-masked p^2
        pik = mt * pk                    # intersection-masked p^2

        card_t = jnp.sum(mt, axis=1, keepdims=True)                # (KMAX, 1)
        a_sum = jnp.sum(pt, axis=1, keepdims=True)
        card_k = jnp.sum(mk, axis=1, keepdims=True)
        b_sum = jnp.sum(pk, axis=1, keepdims=True)
        c_sum = jnp.sum(pik, axis=1, keepdims=True)

        # Assemble one lane-dense (KMAX, 128) slab: stat s lives in lane s.
        col = jax.lax.broadcasted_iota(jnp.int32, (KMAX, _STATS_LANES), 1)
        zero = jnp.zeros((KMAX, _STATS_LANES), jnp.float32)
        slab = (jnp.where(col == 0, card_t, zero)
                + jnp.where(col == 1, a_sum, zero)
                + jnp.where(col == 2, card_k, zero)
                + jnp.where(col == 3, b_sum, zero)
                + jnp.where(col == 4, c_sum, zero))
        acc_ref[...] += slab

        @pl.when(j == pl.num_programs(1) - 1)
        def _():
            out_ref[0] = acc_ref[...]

    return kernel


def _label_stats(pred_bcn, packed_b1n):
    b, c, n = pred_bcn.shape

    # Size the N tile: as large as possible (amortize the ~0.35us per-grid-step
    # overhead) while the f32 intermediates stay within a conservative VMEM
    # budget that fits every TPU generation (v7x: 64 MiB physical).
    bytes_per_lane = (
        2 * c * pred_bcn.dtype.itemsize     # double-buffered pred tile
        + 2 * c * 4                         # f32 cast of pred + p*p temporary
        + 2 * 4                             # double-buffered packed labels
        + 4 * 4                             # p2 / tl / kl / tail-mask rows
        + 5 * KMAX * 4)                     # mt, mk, pt, pk, pik
    tn_cap = max(128, min(_TN_MAX,
                          (_VMEM_BUDGET // bytes_per_lane) // 128 * 128))
    tn = min(tn_cap, ((n + 127) // 128) * 128)
    nt = -(-n // tn)                        # ceil-div; no host-side padding
    needs_tail_mask = (n % tn) != 0

    bytes_accessed = int(
        b * n * (c * pred_bcn.dtype.itemsize + 4)
        + b * KMAX * _STATS_LANES * 4)
    flops = int(b * n * (2 * c + 12 * KMAX))

    return pl.pallas_call(
        _make_stats_kernel(n, tn, needs_tail_mask),
        out_shape=jax.ShapeDtypeStruct((b, KMAX, _STATS_LANES), jnp.float32),
        grid=(b, nt),
        in_specs=[
            pl.BlockSpec((1, c, tn), lambda i, j: (i, 0, j)),
            pl.BlockSpec((1, 1, tn), lambda i, j: (i, 0, j)),
        ],
        out_specs=pl.BlockSpec((1, KMAX, _STATS_LANES), lambda i, j: (i, 0, 0)),
        scratch_shapes=[pltpu.VMEM((KMAX, _STATS_LANES), jnp.float32)],
        compiler_params=pltpu.CompilerParams(
            dimension_semantics=("parallel", "arbitrary"),
            vmem_limit_bytes=48 * 1024 * 1024),
        cost_estimate=pl.CostEstimate(
            flops=flops, transcendentals=0, bytes_accessed=bytes_accessed),
    )(pred_bcn, packed_b1n)


@functools.partial(jax.jit, static_argnames=("sigma_agg", "sigma_dis"))
def aggregation_and_discrimination_loss(pred_similarities,
                                        text_mask_ndi_labels,
                                        kernel_mask_ndi_labels,
                                        sigma_agg=0.5,
                                        sigma_dis=3.0):
    b = pred_similarities.shape[0]
    c = pred_similarities.shape[1]
    pred = pred_similarities.reshape(b, c, -1)                  # native dtype
    n = pred.shape[-1]

    # Pack both label maps into one int32 stream (text: bits 0..15, kernel:
    # bits 16..30): one DMA stream, half the label bytes inside the kernel.
    t = text_mask_ndi_labels.reshape(b, 1, n).astype(jnp.int32)
    k = kernel_mask_ndi_labels.reshape(b, 1, n).astype(jnp.int32)
    packed = (t & 0xFFFF) | (k << 16)

    stats = _label_stats(pred, packed)                          # (B, KMAX, 128)
    card_t = stats[:, :, 0]
    a_v = stats[:, :, 1]
    card_k = stats[:, :, 2]
    b_v = stats[:, :, 3]
    c_v = stats[:, :, 4]

    label_ids = jnp.arange(1, KMAX + 1, dtype=jnp.float32)[None, :]   # (1, KMAX)
    # num_kernels = max kernel label id (the max label is present by
    # definition, so it has cardK >= 1); capped at KMAX.
    num_kernels = jnp.max(jnp.where(card_k > 0.0, label_ids, 0.0), axis=1)  # (B,)
    valid = label_ids <= num_kernels[:, None]                   # (B, KMAX)

    # ---- aggregation loss ----
    r = 1.0 / (card_k + 1.0)
    sq = a_v - 2.0 * r * c_v + r * r * b_v
    sq = jnp.maximum(sq, 0.0)                  # fp guard; exact value >= 0
    norm = jnp.sqrt(sq) - sigma_agg
    # torch.max(norm, 0)[0] on a 0-dim tensor is the identity -> no relu clamp.
    agg_term = jnp.log(norm * norm + 1.0) / (card_t + 1.0)
    l_aggregation = jnp.sum(jnp.where(valid, agg_term, 0.0))

    # ---- discrimination loss ----
    d = b_v / (card_k + 0.001) ** 2            # per-label squared-norm part
    pair_sq = d[:, :, None] + d[:, None, :]    # (B, KMAX, KMAX) disjoint masks
    pnorm = sigma_dis - jnp.sqrt(jnp.maximum(pair_sq, 0.0))
    pterm = jnp.log(pnorm * pnorm + 1.0)
    upper = jnp.triu(jnp.ones((KMAX, KMAX), dtype=bool), k=1)[None, :, :]
    pvalid = valid[:, :, None] & valid[:, None, :] & upper
    l_dis_b = jnp.sum(jnp.where(pvalid, pterm, 0.0), axis=(1, 2))
    denom = num_kernels * (num_kernels - 1.0)
    l_dis_b = jnp.where(num_kernels > 1.0,
                        l_dis_b / jnp.maximum(denom, 1.0), 0.0)
    l_discrimination = jnp.sum(l_dis_b)

    return l_aggregation, l_discrimination


if __name__ == "__main__":
    key = jax.random.PRNGKey(0)
    k1, k2, k3 = jax.random.split(key, 3)

    B, C, H, W = 2, 4, 16, 16
    pred = jax.random.normal(k1, (B, C, H, W), dtype=jnp.float32)
    # integer label maps with values in [0, 4]; 0 = background, labels <= KMAX
    text_labels = jax.random.randint(k2, (B, H, W), 0, 5, dtype=jnp.int32)
    kernel_labels = jax.random.randint(k3, (B, H, W), 0, 5, dtype=jnp.int32)

    l_agg, l_dis = aggregation_and_discrimination_loss(
        pred, text_labels, kernel_labels, sigma_agg=0.5, sigma_dis=3.0)
    jax.block_until_ready((l_agg, l_dis))
    print("KERNEL_OK")
</pallas_src>

<mosaic_0001>
module attributes {stable_mosaic.version = 11 : i64} {
  func.func @kernel(%arg0: i32, %arg1: i32, %arg2: memref<1x4x256xf32, #tpu.memory_space<vmem>>, %arg3: memref<1x1x256xi32, #tpu.memory_space<vmem>>, %arg4: memref<1x8x128xf32, #tpu.memory_space<vmem>>, %arg5: memref<8x128xf32, #tpu.memory_space<vmem>>) attributes {dimension_semantics = [#tpu.dimension_semantics<parallel>, #tpu.dimension_semantics<arbitrary>], iteration_bounds = array<i64: 2, 1>, scalar_prefetch = 0 : i64, scratch_operands = 1 : i64, tpu.core_type = #tpu.core_type<tc>, window_params = [{transform_indices = @transform_0, window_bounds = array<i64: 1, 4, 256>}, {transform_indices = @transform_1, window_bounds = array<i64: 1, 1, 256>}, {transform_indices = @transform_2, window_bounds = array<i64: 1, 8, 128>}]} {
    %c0_i32 = arith.constant 0 : i32
    %0 = arith.cmpi eq, %arg1, %c0_i32 : i32
    %1 = arith.extui %0 : i1 to i32
    %c0_i32_0 = arith.constant 0 : i32
    %2 = arith.cmpi ne, %1, %c0_i32_0 : i32
    scf.if %2 {
      %cst_21 = arith.constant 0.000000e+00 : f32
      %81 = vector.broadcast %cst_21 : f32 to vector<8x128xf32>
      %c0_22 = arith.constant 0 : index
      %c0_23 = arith.constant 0 : index
      %82 = vector.load %arg5[%c0_22, %c0_23] : memref<8x128xf32, #tpu.memory_space<vmem>>, vector<8x128xf32>
      tpu.vector_store %arg5[%c0_22, %c0_23], %81 {strides = array<i32>} : memref<8x128xf32, #tpu.memory_space<vmem>>, vector<8x128xf32>,
    } else {
    }
    %c0 = arith.constant 0 : index
    %c0_1 = arith.constant 0 : index
    %c0_2 = arith.constant 0 : index
    %3 = vector.load %arg2[%c0, %c0_1, %c0_2] : memref<1x4x256xf32, #tpu.memory_space<vmem>>, vector<1x4x256xf32>
    %4 = vector.shape_cast %3 : vector<1x4x256xf32> to vector<4x256xf32>
    %5 = arith.mulf %4, %4 : vector<4x256xf32>
    %cst = arith.constant dense<0.000000e+00> : vector<256xf32>
    %6 = vector.multi_reduction <add>, %5, %cst [0] : vector<4x256xf32> to vector<256xf32>
    %7 = vector.shape_cast %6 : vector<256xf32> to vector<1x256xf32>
    %c0_3 = arith.constant 0 : index
    %c0_4 = arith.constant 0 : index
    %c0_5 = arith.constant 0 : index
    %8 = vector.load %arg3[%c0_3, %c0_4, %c0_5] : memref<1x1x256xi32, #tpu.memory_space<vmem>>, vector<1x1x256xi32>
    %9 = vector.shape_cast %8 : vector<1x1x256xi32> to vector<1x256xi32>
    %c65535_i32 = arith.constant 65535 : i32
    %10 = vector.broadcast %c65535_i32 : i32 to vector<1x256xi32>
    %11 = arith.andi %9, %10 : vector<1x256xi32>
    %c16_i32 = arith.constant 16 : i32
    %12 = vector.broadcast %c16_i32 : i32 to vector<1x256xi32>
    %13 = arith.shrsi %9, %12 : vector<1x256xi32>
    %c65535_i32_6 = arith.constant 65535 : i32
    %14 = vector.broadcast %c65535_i32_6 : i32 to vector<1x256xi32>
    %15 = arith.andi %13, %14 : vector<1x256xi32>
    %16 = tpu.iota {dimensions = array<i32: 0>} : vector<8x1xi32>
    %c1_i32 = arith.constant 1 : i32
    %17 = vector.broadcast %c1_i32 : i32 to vector<8x1xi32>
    %18 = arith.addi %16, %17 : vector<8x1xi32>
    %19 = vector.broadcast %11 : vector<1x256xi32> to vector<8x256xi32>
    %20 = vector.broadcast %18 : vector<8x1xi32> to vector<8x256xi32>
    %21 = arith.cmpi eq, %19, %20 : vector<8x256xi32>
    %22 = arith.extui %21 : vector<8x256xi1> to vector<8x256xi32>
    %23 = arith.sitofp %22 : vector<8x256xi32> to vector<8x256xf32>
    %24 = vector.broadcast %15 : vector<1x256xi32> to vector<8x256xi32>
    %25 = vector.broadcast %18 : vector<8x1xi32> to vector<8x256xi32>
    %26 = arith.cmpi eq, %24, %25 : vector<8x256xi32>
    %27 = arith.extui %26 : vector<8x256xi1> to vector<8x256xi32>
    %28 = arith.sitofp %27 : vector<8x256xi32> to vector<8x256xf32>
    %29 = vector.broadcast %7 : vector<1x256xf32> to vector<8x256xf32>
    %30 = arith.mulf %23, %29 : vector<8x256xf32>
    %31 = vector.broadcast %7 : vector<1x256xf32> to vector<8x256xf32>
    %32 = arith.mulf %28, %31 : vector<8x256xf32>
    %33 = arith.mulf %23, %32 : vector<8x256xf32>
    %cst_7 = arith.constant dense<0.000000e+00> : vector<8xf32>
    %34 = vector.multi_reduction <add>, %23, %cst_7 [1] : vector<8x256xf32> to vector<8xf32>
    %35 = vector.shape_cast %34 : vector<8xf32> to vector<8x1xf32>
    %cst_8 = arith.constant dense<0.000000e+00> : vector<8xf32>
    %36 = vector.multi_reduction <add>, %30, %cst_8 [1] : vector<8x256xf32> to vector<8xf32>
    %37 = vector.shape_cast %36 : vector<8xf32> to vector<8x1xf32>
    %cst_9 = arith.constant dense<0.000000e+00> : vector<8xf32>
    %38 = vector.multi_reduction <add>, %28, %cst_9 [1] : vector<8x256xf32> to vector<8xf32>
    %39 = vector.shape_cast %38 : vector<8xf32> to vector<8x1xf32>
    %cst_10 = arith.constant dense<0.000000e+00> : vector<8xf32>
    %40 = vector.multi_reduction <add>, %32, %cst_10 [1] : vector<8x256xf32> to vector<8xf32>
    %41 = vector.shape_cast %40 : vector<8xf32> to vector<8x1xf32>
    %cst_11 = arith.constant dense<0.000000e+00> : vector<8xf32>
    %42 = vector.multi_reduction <add>, %33, %cst_11 [1] : vector<8x256xf32> to vector<8xf32>
    %43 = vector.shape_cast %42 : vector<8xf32> to vector<8x1xf32>
    %44 = tpu.iota {dimensions = array<i32: 1>} : vector<8x128xi32>
    %cst_12 = arith.constant 0.000000e+00 : f32
    %45 = vector.broadcast %cst_12 : f32 to vector<8x128xf32>
    %c0_i32_13 = arith.constant 0 : i32
    %46 = vector.broadcast %c0_i32_13 : i32 to vector<8x128xi32>
    %47 = arith.cmpi eq, %44, %46 : vector<8x128xi32>
    %48 = vector.shape_cast %35 : vector<8x1xf32> to vector<8x1xf32>
    %49 = vector.broadcast %48 : vector<8x1xf32> to vector<8x128xf32>
    %50 = arith.select %47, %49, %45 : vector<8x128xi1>, vector<8x128xf32>
    %c1_i32_14 = arith.constant 1 : i32
    %51 = vector.broadcast %c1_i32_14 : i32 to vector<8x128xi32>
    %52 = arith.cmpi eq, %44, %51 : vector<8x128xi32>
    %53 = vector.shape_cast %37 : vector<8x1xf32> to vector<8x1xf32>
    %54 = vector.broadcast %53 : vector<8x1xf32> to vector<8x128xf32>
    %55 = arith.select %52, %54, %45 : vector<8x128xi1>, vector<8x128xf32>
    %56 = arith.addf %50, %55 : vector<8x128xf32>
    %c2_i32 = arith.constant 2 : i32
    %57 = vector.broadcast %c2_i32 : i32 to vector<8x128xi32>
    %58 = arith.cmpi eq, %44, %57 : vector<8x128xi32>
    %59 = vector.shape_cast %39 : vector<8x1xf32> to vector<8x1xf32>
    %60 = vector.broadcast %59 : vector<8x1xf32> to vector<8x128xf32>
    %61 = arith.select %58, %60, %45 : vector<8x128xi1>, vector<8x128xf32>
    %62 = arith.addf %56, %61 : vector<8x128xf32>
    %c3_i32 = arith.constant 3 : i32
    %63 = vector.broadcast %c3_i32 : i32 to vector<8x128xi32>
    %64 = arith.cmpi eq, %44, %63 : vector<8x128xi32>
    %65 = vector.shape_cast %41 : vector<8x1xf32> to vector<8x1xf32>
    %66 = vector.broadcast %65 : vector<8x1xf32> to vector<8x128xf32>
    %67 = arith.select %64, %66, %45 : vector<8x128xi1>, vector<8x128xf32>
    %68 = arith.addf %62, %67 : vector<8x128xf32>
    %c4_i32 = arith.constant 4 : i32
    %69 = vector.broadcast %c4_i32 : i32 to vector<8x128xi32>
    %70 = arith.cmpi eq, %44, %69 : vector<8x128xi32>
    %71 = vector.shape_cast %43 : vector<8x1xf32> to vector<8x1xf32>
    %72 = vector.broadcast %71 : vector<8x1xf32> to vector<8x128xf32>
    %73 = arith.select %70, %72, %45 : vector<8x128xi1>, vector<8x128xf32>
    %74 = arith.addf %68, %73 : vector<8x128xf32>
    %c0_15 = arith.constant 0 : index
    %c0_16 = arith.constant 0 : index
    %75 = vector.load %arg5[%c0_15, %c0_16] : memref<8x128xf32, #tpu.memory_space<vmem>>, vector<8x128xf32>
    %76 = arith.addf %75, %74 : vector<8x128xf32>
    %c0_17 = arith.constant 0 : index
    %c0_18 = arith.constant 0 : index
    %77 = vector.load %arg5[%c0_17, %c0_18] : memref<8x128xf32, #tpu.memory_space<vmem>>, vector<8x128xf32>
    tpu.vector_store %arg5[%c0_17, %c0_18], %76 {strides = array<i32>} : memref<8x128xf32, #tpu.memory_space<vmem>>, vector<8x128xf32>,
    %c0_i32_19 = arith.constant 0 : i32
    %78 = arith.cmpi eq, %arg1, %c0_i32_19 : i32
    %79 = arith.extui %78 : i1 to i32
    %c0_i32_20 = arith.constant 0 : i32
    %80 = arith.cmpi ne, %79, %c0_i32_20 : i32
    scf.if %80 {
      %c0_21 = arith.constant 0 : index
      %c0_22 = arith.constant 0 : index
      %81 = vector.load %arg5[%c0_21, %c0_22] : memref<8x128xf32, #tpu.memory_space<vmem>>, vector<8x128xf32>
      %c0_23 = arith.constant 0 : index
      %c0_24 = arith.constant 0 : index
      %c0_25 = arith.constant 0 : index
      %82 = vector.load %arg4[%c0_23, %c0_24, %c0_25] : memref<1x8x128xf32, #tpu.memory_space<vmem>>, vector<1x8x128xf32>
      %83 = vector.shape_cast %82 : vector<1x8x128xf32> to vector<8x128xf32>
      %84 = vector.shape_cast %81 : vector<8x128xf32> to vector<1x8x128xf32>
      tpu.vector_store %arg4[%c0_23, %c0_24, %c0_25], %84 {strides = array<i32>} : memref<1x8x128xf32, #tpu.memory_space<vmem>>, vector<1x8x128xf32>,
    } else {
    }
    return
  }
  func.func @transform_0(%arg0: i32, %arg1: i32) -> (i32, i32, i32) {
    %c0_i32 = arith.constant 0 : i32
    %c0_i32_0 = arith.constant 0 : i32
    return %arg0, %c0_i32, %arg1 : i32, i32, i32
  }
  func.func @transform_1(%arg0: i32, %arg1: i32) -> (i32, i32, i32) {
    %c0_i32 = arith.constant 0 : i32
    %c0_i32_0 = arith.constant 0 : i32
    return %arg0, %c0_i32, %arg1 : i32, i32, i32
  }
  func.func @transform_2(%arg0: i32, %arg1: i32) -> (i32, i32, i32) {
    %c0_i32 = arith.constant 0 : i32
    %c0_i32_0 = arith.constant 0 : i32
    %c0_i32_1 = arith.constant 0 : i32
    return %arg0, %c0_i32, %c0_i32_0 : i32, i32, i32
  }
}

</mosaic_0001>

<llo_original>
// kernel: aggregation_and_discrimination_loss.1
$region0: #{aggregation_and_discrimination_loss.1}
  #allocation0 [shape = 'u32[]', space=smem, size = 0x4, offset = 0x4, fixed_abs, tag = 'smem constant byte address 0x4 - core index']
  #allocation1 [shape = 'u32[72,128]{1,0:T(1,128)}', space=vmem, size = 0x9000, scoped, tag = 'internal scratch']
  #allocation2 [shape = 'f32[8,128]{1,0:T(8,128)}', space=vmem, size = 0x1000, scoped, tag = 'scratch operand']
  %s0 = inlined_call_operand.vmem [shape: f32[2,4,256], index: 0, kind: input, shape index: {}]
  %s1 = inlined_call_operand.vmem [shape: s32[2,1,256], index: 1, kind: input, shape index: {}]
  %s2 = inlined_call_operand.vmem [shape: f32[2,8,128], index: 2, kind: output, shape index: {}]
  %s3 = sld [smem:[#allocation0]]
  $region49: #{aggregation_and_discrimination_loss.1} parent=0
    _
  %s5 = ssub.s32 1, %s3
  %s6 = scalar_select 0, %s5, %s3
  loop: start=0, step=1, limit=4
  $region2: #{aggregation_and_discrimination_loss.1} parent=0 // loop_pre_header
    _
  $region3: #{aggregation_and_discrimination_loss.1} parent=0 // loop_header
    %s8 = sphi 0, %s12
    %p9 = scmp.ge.s32.totalorder %s8, 4
    %s15 = sphi 0, %s27
    %s16 = sphi 0, %s23
    %s17 = sphi 0, %s15
    %s18 = sphi 0, %s16
    %s19 = sphi 0, %s17
    %s20 = sphi 0, %s18
    %s32 = sphi 0, %s34
    %s35 = sphi 0, %s32
    %s36 = sphi 0, %s35
    %s52 = sphi 0, %s36
    %s60 = sphi 0, %s62
    %s63 = sphi 0, %s60
    %s64 = sphi 0, %s63
    %s80 = sphi 0, %s64
    %s86 = sphi 0, %s88
    %s89 = sphi 0, %s86
    %s90 = sphi 0, %s89
    %s106 = sphi 0, %s90
  $region4: #{aggregation_and_discrimination_loss.1} parent=0 // loop_header_branch
    %11 = sbr.rel (%p9) target = $region8
  $region5: #{aggregation_and_discrimination_loss.1} parent=0 // loop_body
    %s13 = ssub.s32 %s8, 1
    %s14 = ssub.s32 %s8, 2
    %s21 = sadd.s32 1, %s16
    %p22 = scmp.ge.s32.totalorder %s21, 1
    %s23 = scalar_select %p22, 0, %s21
    %s24 = sadd.s32 1, %s15
    %s25 = scalar_select %p22, %s24, %s15
    %p26 = scmp.ge.s32.totalorder %s25, 2
    %s27 = scalar_select %p26, 0, %s25
    %s28 = ssub.s32 %s15, %s27
    %s29 = ssub.s32 %s16, %s23
    %s30 = sor.u32 %s28, %s29
    %p31 = scmp.eq.s32.totalorder %s30, 0
    %s33 = sadd.s32 %s32, 1
    %s34 = scalar_select %p31, %s32, %s33
    %p37 = pneg %p31
    %p38 = scmp.eq.s32.totalorder %s8, 1
    %p39 = por %p37, %p38
    %p40 = scmp.ne.s32.totalorder %s32, %s35
    %p41 = scmp.eq.s32.totalorder %s8, 0
    %p42 = por %p40, %p41
    %p43 = scmp.ne.s32.totalorder %s32, %s35
    %p44 = scmp.eq.s32.totalorder %s13, 1
    %p45 = por %p43, %p44
    %p46 = scmp.ne.s32.totalorder %s35, %s36
    %p47 = scmp.eq.s32.totalorder %s13, 0
    %p48 = por %p46, %p47
    %p49 = scmp.ne.s32.totalorder %s35, %s36
    %p50 = scmp.eq.s32.totalorder %s14, 1
    %p51 = por %p49, %p50
    %p53 = scmp.ne.s32.totalorder %s36, %s52
    %p54 = scmp.eq.s32.totalorder %s14, 0
    %p55 = por %p53, %p54
    %s56 = ssub.s32 %s15, %s27
    %s57 = ssub.s32 %s16, %s23
    %s58 = sor.u32 %s56, %s57
    %p59 = scmp.eq.s32.totalorder %s58, 0
    %s61 = sadd.s32 %s60, 1
    %s62 = scalar_select %p59, %s60, %s61
    %p65 = pneg %p59
    %p66 = scmp.eq.s32.totalorder %s8, 1
    %p67 = por %p65, %p66
    %p68 = scmp.ne.s32.totalorder %s60, %s63
    %p69 = scmp.eq.s32.totalorder %s8, 0
    %p70 = por %p68, %p69
    %p71 = scmp.ne.s32.totalorder %s60, %s63
    %p72 = scmp.eq.s32.totalorder %s13, 1
    %p73 = por %p71, %p72
    %p74 = scmp.ne.s32.totalorder %s63, %s64
    %p75 = scmp.eq.s32.totalorder %s13, 0
    %p76 = por %p74, %p75
    %p77 = scmp.ne.s32.totalorder %s63, %s64
    %p78 = scmp.eq.s32.totalorder %s14, 1
    %p79 = por %p77, %p78
    %p81 = scmp.ne.s32.totalorder %s64, %s80
    %p82 = scmp.eq.s32.totalorder %s14, 0
    %p83 = por %p81, %p82
    %s84 = ssub.s32 %s15, %s27
    %p85 = scmp.eq.s32.totalorder %s84, 0
    %s87 = sadd.s32 %s86, 1
    %s88 = scalar_select %p85, %s86, %s87
    %p91 = pneg %p85
    %p92 = scmp.eq.s32.totalorder %s8, 1
    %p93 = por %p91, %p92
    %p94 = scmp.ne.s32.totalorder %s86, %s89
    %p95 = scmp.eq.s32.totalorder %s8, 0
    %p96 = por %p94, %p95
    %p97 = scmp.ne.s32.totalorder %s86, %s89
    %p98 = scmp.eq.s32.totalorder %s13, 1
    %p99 = por %p97, %p98
    %p100 = scmp.ne.s32.totalorder %s89, %s90
    %p101 = scmp.eq.s32.totalorder %s13, 0
    %p102 = por %p100, %p101
    %p103 = scmp.ne.s32.totalorder %s89, %s90
    %p104 = scmp.eq.s32.totalorder %s14, 1
    %p105 = por %p103, %p104
    %p107 = scmp.ne.s32.totalorder %s90, %s106
    %p108 = scmp.eq.s32.totalorder %s14, 0
    %p109 = por %p107, %p108
    %p110 = scmp.le.s32.totalorder 1, %s8
    %p111 = scmp.lt.s32.totalorder %s8, 3
    %p112 = pnand %p110, %p111
    %p113 = pneg %p112
    // Predicated region
    $region9: #{aggregation_and_discrimination_loss.1} parent=5 // pred_check
      _
    $region10: #{aggregation_and_discrimination_loss.1} parent=5 // pred_check_branch
      %115 = sbr.rel (%p112) target = $region12
    $region11: #{aggregation_and_discrimination_loss.1} parent=5 // pred_region
      %s116 = ssub.s32 %s8, 1
    $region12: #{aggregation_and_discrimination_loss.1} parent=5 // pred_fallthru
      _
    %p117 = scmp.lt.s32.totalorder %s8, 2
    // Predicated region
    $region13: #{aggregation_and_discrimination_loss.1} parent=5 // pred_check
      %p118 = pneg %p117
    $region14: #{aggregation_and_discrimination_loss.1} parent=5 // pred_check_branch
      %120 = sbr.rel (%p118) target = $region16
    $region15: #{aggregation_and_discrimination_loss.1} parent=5 // pred_region
      // Predicated region
      $region17: #{aggregation_and_discrimination_loss.1} parent=15 // pred_check
        %p121 = pneg %p42
      $region18: #{aggregation_and_discrimination_loss.1} parent=15 // pred_check_branch
        %123 = sbr.rel (%p121) target = $region20
      $region19: #{aggregation_and_discrimination_loss.1} parent=15 // pred_region
        %s124 = smul.u32 2, %s16
        %p125 = scmp.lt.s32.totalorder %s15, 1
        %s126 = scalar_select %p125, %s15, 1
        %p127 = scmp.lt.s32.totalorder %s124, 1
        %s128 = scalar_select %p127, %s124, 1
        %s129 = smul.addr %s126, 2
        %s130 = sadd.s32 %s128, %s129
        %s131 = smul.addr %s130, 4
        %s132 = scalar_lea.vmem %s0, %s131
        %s133 = smul.u32 2, %s16
      $region20: #{aggregation_and_discrimination_loss.1} parent=15 // pred_fallthru
        _
      // Predicated region
      $region21: #{aggregation_and_discrimination_loss.1} parent=15 // pred_check
        %p134 = pneg %p70
      $region22: #{aggregation_and_discrimination_loss.1} parent=15 // pred_check_branch
        %136 = sbr.rel (%p134) target = $region24
      $region23: #{aggregation_and_discrimination_loss.1} parent=15 // pred_region
        %s137 = smul.u32 2, %s16
        %p138 = scmp.lt.s32.totalorder %s15, 1
        %s139 = scalar_select %p138, %s15, 1
        %p140 = scmp.lt.s32.totalorder %s137, 1
        %s141 = scalar_select %p140, %s137, 1
        %s142 = smul.addr %s139, 2
        %s143 = sadd.s32 %s141, %s142
        %s144 = scalar_lea.vmem %s1, %s143
        %s145 = smul.u32 2, %s16
      $region24: #{aggregation_and_discrimination_loss.1} parent=15 // pred_fallthru
        _
    $region16: #{aggregation_and_discrimination_loss.1} parent=5 // pred_fallthru
      _
    %p146 = scmp.le.s32.totalorder 1, %s8
    %p147 = scmp.lt.s32.totalorder %s8, 3
    %p148 = pnand %p146, %p147
    %p149 = pneg %p148
    // Predicated region
    $region25: #{aggregation_and_discrimination_loss.1} parent=5 // pred_check
      _
    $region26: #{aggregation_and_discrimination_loss.1} parent=5 // pred_check_branch
      %151 = sbr.rel (%p148) target = $region28
    $region27: #{aggregation_and_discrimination_loss.1} parent=5 // pred_region
      %s152 = ssub.s32 %s8, 1
      %s153 = smul.u32 2, %s18
      %p154 = scmp.lt.s32.totalorder %s17, 1
      %s155 = scalar_select %p154, %s17, 1
      %p156 = scmp.lt.s32.totalorder %s153, 1
      %s157 = scalar_select %p156, %s153, 1
      %s158 = smul.addr %s155, 2
      %s159 = sadd.s32 %s157, %s158
      %s160 = smul.addr %s159, 4
      %s161 = scalar_lea.vmem %s0, %s160
      %p162 = pneg %p48
      %p163 = pneg %p45
      %s164 = smul.u32 2, %s18
      %p165 = scmp.lt.s32.totalorder %s17, 1
      %s166 = scalar_select %p165, %s17, 1
      %p167 = scmp.lt.s32.totalorder %s164, 1
      %s168 = scalar_select %p167, %s164, 1
      %s169 = smul.addr %s166, 2
      %s170 = sadd.s32 %s168, %s169
      %s171 = scalar_lea.vmem %s1, %s170
      %p172 = pneg %p76
      %p173 = pneg %p73
      %p174 = pneg %p102
      %p175 = pneg %p99
      %p176 = scmp.lt.s32.totalorder %s17, 1
      %s177 = scalar_select %p176, %s17, 1
      %s178 = smul.addr %s177, 8
      %s179 = scalar_lea.vmem %s2, %s178
      %s180 = smul.u32 2, %s18
      %p181 = scmp.lt.s32.totalorder %s17, 1
      %s182 = scalar_select %p181, %s17, 1
      %p183 = scmp.lt.s32.totalorder %s180, 1
      %s184 = scalar_select %p183, %s180, 1
      %s185 = smul.addr %s182, 2
      %s186 = sadd.s32 %s184, %s185
      %s187 = smul.addr %s186, 4
      %s188 = scalar_lea.vmem %s0, %s187
      %s189 = smul.u32 2, %s18
      %s190 = smul.u32 2, %s18
      %p191 = scmp.lt.s32.totalorder %s17, 1
      %s192 = scalar_select %p191, %s17, 1
      %p193 = scmp.lt.s32.totalorder %s190, 1
      %s194 = scalar_select %p193, %s190, 1
      %s195 = smul.addr %s192, 2
      %s196 = sadd.s32 %s194, %s195
      %s197 = scalar_lea.vmem %s1, %s196
      %s198 = smul.u32 2, %s18
      %p199 = scmp.lt.s32.totalorder %s17, 1
      %s200 = scalar_select %p199, %s17, 1
      %s201 = smul.addr %s200, 8
      %s202 = scalar_lea.vmem %s2, %s201
      %p203 = scmp.eq.s32.totalorder %s18, 0
      // Predicated region
      $region29: #{aggregation_and_discrimination_loss.1} parent=27 // pred_check
        %p204 = pneg %p203
      $region30: #{aggregation_and_discrimination_loss.1} parent=27 // pred_check_branch
        %206 = sbr.rel (%p204) target = $region32
      $region31: #{aggregation_and_discrimination_loss.1} parent=27 // pred_region
        %207 = vst [vmem:[#allocation2] sm:$0xff] 0.0
      $region32: #{aggregation_and_discrimination_loss.1} parent=27 // pred_fallthru
        _
      %v208 = vld [vmem:[%s188] sm:$0xff]
      %v209 = vmul.f32 %v208, %v208
      %211 = vst [vmem:[#allocation1] ss:$2 sm:$0xff] %v209
      %v212 = vld.sshfl [vmem:[#allocation1] sm:$0xff pattern:$0x75316420]
      %v213 = vld.sshfl [vmem:[#allocation1 + $0x8] sm:$0xff pattern:$0x75316420]
      %vm216 = vcmask 1043456
      %v217 = vsel %vm216, %v212, 0.0
      %v218 = vrot.slane %v217, 4
      %v219 = vadd.f32 %v217, %v218
      %v220 = vrot.slane %v219, 2
      %v221 = vadd.f32 %v219, %v220
      %v222 = vrot.slane %v221, 1
      %v223 = vadd.f32 %v221, %v222
      %v224 = vsel %vm216, %v213, 0.0
      %v225 = vrot.slane %v224, 4
      %v226 = vadd.f32 %v224, %v225
      %v227 = vrot.slane %v226, 2
      %v228 = vadd.f32 %v226, %v227
      %v229 = vrot.slane %v228, 1
      %v230 = vadd.f32 %v228, %v229
      %v231 = vld [vmem:[%s197] sm:$0x3]
      %v232 = vand.u32 %v231, 65535
      %v233 = vshra.s32 %v231, 16
      %v234 = vand.u32 %v233, 65535
      %v235 = vlaneseq
      %v236 = vshrl.u32 %v235, 7
      %v237 = vadd.s32 %v236, 1
      %v238 = vperm.slane %v232, 0
      %v239 = vperm.slane %v232, 1
      %vm240 = vcmp.eq.s32.totalorder %v238, %v237
      %vm241 = vcmp.eq.s32.totalorder %v239, %v237
      %v242 = vsel %vm240, 1, 0
      %v243 = vsel %vm241, 1, 0
      %v244 = vcvt.s32.f32 %v242
      %v245 = vcvt.s32.f32 %v243
      %v246 = vperm.slane %v234, 0
      %v247 = vperm.slane %v234, 1
      %vm248 = vcmp.eq.s32.totalorder %v246, %v237
      %vm249 = vcmp.eq.s32.totalorder %v247, %v237
      %v250 = vsel %vm248, 1, 0
      %v251 = vsel %vm249, 1, 0
      %v252 = vcvt.s32.f32 %v250
      %v253 = vcvt.s32.f32 %v251
      %v254 = vmul.f32 %v244, %v223
      %v255 = vmul.f32 %v245, %v230
      %v256 = vmul.f32 %v252, %v223
      %v257 = vmul.f32 %v253, %v230
      %v258 = vmul.f32 %v244, %v256
      %v259 = vmul.f32 %v245, %v257
      %v260 = vadd.f32 %v244, %v245
      %261 = vadd.xlane.f32.xlu0 %v260
      %v262 = vpop.xlane.xlu0 %261
      %v263 = vadd.f32 %v254, %v255
      %264 = vadd.xlane.f32.xlu0 %v263
      %v265 = vpop.xlane.xlu0 %264
      %v266 = vadd.f32 %v252, %v253
      %267 = vadd.xlane.f32.xlu0 %v266
      %v268 = vpop.xlane.xlu0 %267
      %v269 = vadd.f32 %v256, %v257
      %270 = vadd.xlane.f32.xlu0 %v269
      %v271 = vpop.xlane.xlu0 %270
      %v272 = vadd.f32 %v258, %v259
      %273 = vadd.xlane.f32.xlu0 %v272
      %v274 = vpop.xlane.xlu0 %273
      %v275 = vlaneseq
      %v276 = vand.u32 %v275, 127
      %vm277 = vcmp.eq.s32.totalorder %v276, 0
      %v278 = vsel %vm277, %v262, 0.0
      %vm279 = vcmp.eq.s32.totalorder %v276, 1
      %v280 = vsel %vm279, %v265, 0.0
      %v281 = vadd.f32 %v278, %v280
      %vm282 = vcmp.eq.s32.totalorder %v276, 2
      %v283 = vsel %vm282, %v268, 0.0
      %v284 = vadd.f32 %v281, %v283
      %vm285 = vcmp.eq.s32.totalorder %v276, 3
      %v286 = vsel %vm285, %v271, 0.0
      %v287 = vadd.f32 %v284, %v286
      %vm288 = vcmp.eq.s32.totalorder %v276, 4
      %v289 = vsel %vm288, %v274, 0.0
      %v290 = vadd.f32 %v287, %v289
      %v291 = vld [vmem:[#allocation2] sm:$0xff]
      %v292 = vadd.f32 %v291, %v290
      %293 = vst [vmem:[#allocation2] sm:$0xff] %v292
      // Predicated region
      $region33: #{aggregation_and_discrimination_loss.1} parent=27 // pred_check
        %p294 = pneg %p203
      $region34: #{aggregation_and_discrimination_loss.1} parent=27 // pred_check_branch
        %296 = sbr.rel (%p294) target = $region36
      $region35: #{aggregation_and_discrimination_loss.1} parent=27 // pred_region
        %v297 = vld [vmem:[#allocation2] sm:$0xff]
        %298 = vst [vmem:[%s202] sm:$0xff] %v297
      $region36: #{aggregation_and_discrimination_loss.1} parent=27 // pred_fallthru
        _
      %p299 = scmp.lt.s32.totalorder %s17, 1
      %s300 = scalar_select %p299, %s17, 1
      %s301 = smul.addr %s300, 8
      %s302 = scalar_lea.vmem %s2, %s301
      // Predicated region
      $region37: #{aggregation_and_discrimination_loss.1} parent=27 // pred_check
        %p303 = pneg %p99
      $region38: #{aggregation_and_discrimination_loss.1} parent=27 // pred_check_branch
        %305 = sbr.rel (%p303) target = $region40
      $region39: #{aggregation_and_discrimination_loss.1} parent=27 // pred_region
        _
      $region40: #{aggregation_and_discrimination_loss.1} parent=27 // pred_fallthru
        _
    $region28: #{aggregation_and_discrimination_loss.1} parent=5 // pred_fallthru
      _
    %p306 = scmp.le.s32.totalorder 2, %s8
    // Predicated region
    $region41: #{aggregation_and_discrimination_loss.1} parent=5 // pred_check
      %p307 = pneg %p306
    $region42: #{aggregation_and_discrimination_loss.1} parent=5 // pred_check_branch
      %309 = sbr.rel (%p307) target = $region44
    $region43: #{aggregation_and_discrimination_loss.1} parent=5 // pred_region
      %s310 = ssub.s32 %s8, 2
      // Predicated region
      $region45: #{aggregation_and_discrimination_loss.1} parent=43 // pred_check
        %p311 = pneg %p105
      $region46: #{aggregation_and_discrimination_loss.1} parent=43 // pred_check_branch
        %313 = sbr.rel (%p311) target = $region48
      $region47: #{aggregation_and_discrimination_loss.1} parent=43 // pred_region
        %p314 = scmp.lt.s32.totalorder %s19, 1
        %s315 = scalar_select %p314, %s19, 1
        %s316 = smul.addr %s315, 8
        %s317 = scalar_lea.vmem %s2, %s316
      $region48: #{aggregation_and_discrimination_loss.1} parent=43 // pred_fallthru
        _
    $region44: #{aggregation_and_discrimination_loss.1} parent=5 // pred_fallthru
      _
  $region6: #{aggregation_and_discrimination_loss.1} parent=0 // loop_footer
    %s12 = sadd.s32 1, %s8
  $region7: #{aggregation_and_discrimination_loss.1} parent=0 // loop_footer_branch
    %7 = sbr.rel target = $region3
  $region8: #{aggregation_and_discrimination_loss.1} parent=0 // loop_exit
    _

</llo_original>
